<compile_context>
chip_gen: v7x
topology: tpu7x:2x2x1
jax: 0.10.0
libtpu: 0.0.40
codegen_flags: <defaults>
</compile_context>

<pallas_src>
import math

import jax
import jax.numpy as jnp
from jax.experimental import pallas as pl
from jax.experimental.pallas import tpu as pltpu


_TARGET_BLOCK_BYTES = 2 * 1024 * 1024   # ~2 MiB per x block
_MIN_PALLAS_BYTES = 1 << 20             # below this, plain XLA add wins


# --------------------------------------------------------------------------
# Kernel
# --------------------------------------------------------------------------
def _pe_add_kernel(x_ref, pe_ref, o_ref):
    # x_ref / o_ref: (tb, tc) tile of the flattened (B, S*D) input / output.
    # pe_ref:        (1, tc)  matching column slice of the flattened pe table
    #                         (broadcast over the row/batch tile).
    o_ref[...] = x_ref[...] + pe_ref[...]


# --------------------------------------------------------------------------
# Tiling helpers
# --------------------------------------------------------------------------
def _largest_divisor_multiple(n: int, unit: int, cap: int) -> int:
    """Largest t <= cap that divides n and is a multiple of `unit`.

    Falls back to n itself (a full-extent block is always a legal block dim).
    """
    cap = min(cap, n)
    t = (cap // unit) * unit
    while t >= unit:
        if n % t == 0:
            return t
        t -= unit
    return n


def _choose_tiles(B: int, N: int, itemsize: int, target_bytes: int):
    """Pick (tb, tc) block shape for the flattened (B, N) problem.

    tb is either B or a multiple of 8 dividing B; tc is either N or a multiple
    of 128 dividing N (so every block is legal and there are no edge blocks).
    Aims for tb * tc * itemsize ~= target_bytes.
    """
    target_elems = max(8 * 128, target_bytes // itemsize)
    if B * N <= target_elems:
        return B, N  # whole problem fits in one block: single grid point
    tb = B
    if B > 8 and B % 8 == 0 and B * 128 > target_elems:
        # Batch alone blows the block budget even at minimum lane width:
        # tile the row axis too.
        tb = _largest_divisor_multiple(B, 8, max(8, target_elems // 128))
    tc = _largest_divisor_multiple(N, 128, max(128, target_elems // tb))
    return tb, tc


# --------------------------------------------------------------------------
# pe table (matches the PyTorch __init__ formula; safe for odd d_model too)
# --------------------------------------------------------------------------
def make_positional_encoding_table(d_model: int, max_len: int = 100) -> jnp.ndarray:
    position = jnp.arange(0, max_len, dtype=jnp.float32)[:, None]            # (L, 1)
    div_term = jnp.exp(
        jnp.arange(0, d_model, 2, dtype=jnp.float32)
        * (-(math.log(10000.0) / d_model))
    )                                                                         # (ceil(D/2),)
    angles = position * div_term                                              # (L, ceil(D/2))
    pe = jnp.zeros((max_len, d_model), dtype=jnp.float32)
    pe = pe.at[:, 0::2].set(jnp.sin(angles))
    pe = pe.at[:, 1::2].set(jnp.cos(angles[:, : d_model // 2]))               # odd-D safe
    return pe                                                                 # (L, D)


# --------------------------------------------------------------------------
# Forward
# --------------------------------------------------------------------------
def _positional_encoding_pallas(
    x: jnp.ndarray, pe: jnp.ndarray, *, target_block_bytes: int = _TARGET_BLOCK_BYTES
) -> jnp.ndarray:
    """Pallas path: x (B, S, D) + pe[:S] broadcast over batch."""
    B, S, D = x.shape
    N = S * D
    itemsize = jnp.dtype(x.dtype).itemsize

    # Lane-dense flattening (free metadata reshapes of contiguous arrays).
    x2 = x.reshape(B, N)
    pe2 = pe[:S, :].astype(x.dtype).reshape(1, N)

    tb, tc = _choose_tiles(B, N, itemsize, target_block_bytes)
    nr, nc = B // tb, N // tc
    # Row (batch) axis innermost: pe block index is constant across the inner
    # loop, so the pipeline skips re-fetching it for every row tile.
    grid = (nc, nr)

    # VMEM budget: double-buffered x/out tiles + pe strip, with headroom.
    block_vmem = 2 * (2 * tb * tc + tc) * itemsize
    vmem_limit = int(min(max(2 * block_vmem, 32 * 1024 * 1024), 48 * 1024 * 1024))

    out2 = pl.pallas_call(
        _pe_add_kernel,
        out_shape=jax.ShapeDtypeStruct((B, N), x.dtype),
        grid_spec=pltpu.PrefetchScalarGridSpec(
            num_scalar_prefetch=0,
            grid=grid,
            in_specs=[
                pl.BlockSpec((tb, tc), lambda j, i: (i, j)),   # x row/col tile
                pl.BlockSpec((1, tc), lambda j, i: (0, j)),    # pe col tile, shared over rows
            ],
            out_specs=pl.BlockSpec((tb, tc), lambda j, i: (i, j)),
        ),
        compiler_params=pltpu.CompilerParams(
            dimension_semantics=("parallel", "parallel"),
            vmem_limit_bytes=vmem_limit,
        ),
    )(x2, pe2)
    return out2.reshape(B, S, D)


def positional_encoding_forward(x: jnp.ndarray, pe: jnp.ndarray) -> jnp.ndarray:
    """Public entry: auto-dispatch (tiny inputs use the fused XLA add)."""
    B, S, D = x.shape
    if x.size * jnp.dtype(x.dtype).itemsize < _MIN_PALLAS_BYTES:
        return x + pe[None, :S, :].astype(x.dtype)
    return _positional_encoding_pallas(x, pe)


# --------------------------------------------------------------------------
# Self-test
# --------------------------------------------------------------------------
if __name__ == "__main__":
    key = jax.random.PRNGKey(0)
    k1, k2, k3 = jax.random.split(key, 3)

    # Shapes consistent with the PyTorch module (batch=2, seq=8, d_model=32).
    batch, seq, d_model, max_len = 2, 8, 32, 100
    x = jax.random.normal(k1, (batch, seq, d_model), dtype=jnp.float32)
    pe = make_positional_encoding_table(d_model, max_len)

    # 1) Force the Pallas path (single lane-dense block at this size).
    out = _positional_encoding_pallas(x, pe)
    out = jax.block_until_ready(out)
    ref = x + pe[None, :seq, :]
    assert out.shape == x.shape
    assert jnp.allclose(out, ref, atol=1e-6, rtol=1e-6), "mismatch vs reference (small)"

    # 2) Exercise the multi-column-tile grid path with a forced small budget.
    x2 = jax.random.normal(k2, (4, 32, 64), dtype=jnp.float32)
    pe2 = make_positional_encoding_table(64, max_len)
    out2 = _positional_encoding_pallas(x2, pe2, target_block_bytes=4096)
    out2 = jax.block_until_ready(out2)
    ref2 = x2 + pe2[None, :32, :]
    assert jnp.allclose(out2, ref2, atol=1e-6, rtol=1e-6), "mismatch vs reference (col tiled)"

    # 3) Exercise row (batch) tiling + pe re-use across row tiles.
    x3 = jax.random.normal(k3, (32, 8, 128), dtype=jnp.float32)
    pe3 = make_positional_encoding_table(128, max_len)
    out3 = _positional_encoding_pallas(x3, pe3, target_block_bytes=8192)
    out3 = jax.block_until_ready(out3)
    ref3 = x3 + pe3[None, :8, :]
    assert jnp.allclose(out3, ref3, atol=1e-6, rtol=1e-6), "mismatch vs reference (row tiled)"

    # 4) Public wrapper (auto-dispatch; tiny input goes through plain XLA add).
    out4 = jax.block_until_ready(positional_encoding_forward(x, pe))
    assert jnp.allclose(out4, ref, atol=1e-6, rtol=1e-6), "mismatch vs reference (dispatch)"

    print("KERNEL_OK")
</pallas_src>

<mosaic_0001>
module attributes {stable_mosaic.version = 11 : i64} {
  func.func @_pe_add_kernel(%arg0: i32, %arg1: i32, %arg2: memref<2x256xf32, #tpu.memory_space<vmem>>, %arg3: memref<1x256xf32, #tpu.memory_space<vmem>>, %arg4: memref<2x256xf32, #tpu.memory_space<vmem>>) attributes {dimension_semantics = [#tpu.dimension_semantics<parallel>, #tpu.dimension_semantics<parallel>], iteration_bounds = array<i64: 1, 1>, scalar_prefetch = 0 : i64, scratch_operands = 0 : i64, tpu.core_type = #tpu.core_type<tc>, window_params = [{transform_indices = @transform_0, window_bounds = array<i64: 2, 256>}, {transform_indices = @transform_1, window_bounds = array<i64: 1, 256>}, {transform_indices = @transform_2, window_bounds = array<i64: 2, 256>}]} {
    %c0 = arith.constant 0 : index
    %c0_0 = arith.constant 0 : index
    %0 = vector.load %arg2[%c0, %c0_0] : memref<2x256xf32, #tpu.memory_space<vmem>>, vector<2x256xf32>
    %c0_1 = arith.constant 0 : index
    %c0_2 = arith.constant 0 : index
    %1 = vector.load %arg3[%c0_1, %c0_2] : memref<1x256xf32, #tpu.memory_space<vmem>>, vector<1x256xf32>
    %2 = vector.broadcast %1 : vector<1x256xf32> to vector<2x256xf32>
    %3 = arith.addf %0, %2 : vector<2x256xf32>
    %c0_3 = arith.constant 0 : index
    %c0_4 = arith.constant 0 : index
    %4 = vector.load %arg4[%c0_3, %c0_4] : memref<2x256xf32, #tpu.memory_space<vmem>>, vector<2x256xf32>
    tpu.vector_store %arg4[%c0_3, %c0_4], %3 {strides = array<i32>} : memref<2x256xf32, #tpu.memory_space<vmem>>, vector<2x256xf32>,
    return
  }
  func.func @transform_0(%arg0: i32, %arg1: i32) -> (i32, i32) {
    %c0_i32 = arith.constant 0 : i32
    return %arg1, %arg0 : i32, i32
  }
  func.func @transform_1(%arg0: i32, %arg1: i32) -> (i32, i32) {
    %c0_i32 = arith.constant 0 : i32
    %c0_i32_0 = arith.constant 0 : i32
    return %c0_i32, %arg0 : i32, i32
  }
  func.func @transform_2(%arg0: i32, %arg1: i32) -> (i32, i32) {
    %c0_i32 = arith.constant 0 : i32
    return %arg1, %arg0 : i32, i32
  }
}

</mosaic_0001>

<llo_original>
// kernel: tpu_custom_call.1
$region0: #{tpu_custom_call.1}
  #allocation0 [shape = 'u32[]', space=smem, size = 0x4, offset = 0x4, fixed_abs, tag = 'smem constant byte address 0x4 - core index']
  #allocation1 [shape = 'u32[144,128]{1,0:T(1,128)}', space=vmem, size = 0x12000, scoped, tag = 'internal scratch']
  %s0 = inlined_call_operand.hbm [shape: f32[2,256], index: 0, kind: input, shape index: {}]
  %s1 = inlined_call_operand.vmem [shape: f32[1,256], index: 1, kind: input, shape index: {}]
  %s2 = inlined_call_operand.hbm [shape: f32[2,256], index: 2, kind: output, shape index: {}]
  %s3 = sld [smem:[#allocation0]]
  $region22: #{tpu_custom_call.1} parent=0
    _
  %s5 = ssub.s32 1, %s3
  %s6 = scalar_select 0, %s5, %s3
  $region1: #{tpu_custom_call.1} parent=0
    #allocation2 [shape = 'u8[2048]{0}', space=vmem, size = 0x800, scoped, tag = 'input window, operand 0, single buffered']
    #allocation3 [shape = 's32[1]{0}', space=sflag, size = 0x4, scoped, tag = 'scoped memory for tpu_custom_call.1']
    #allocation4 [shape = 's32[1]{0}', space=sflag, size = 0x4, scoped, tag = 'scoped memory for tpu_custom_call.1']
    #allocation5 [shape = 'u8[2048]{0}', space=vmem, size = 0x800, scoped, tag = 'output window, operand 0, single buffered']
    %7 = vsyncpa [#allocation3], 0
    %8 = vsyncpa [#allocation4], 0
    // Predicated region
    $region2: #{tpu_custom_call.1} parent=1 // pred_check
      _
    $region3: #{tpu_custom_call.1} parent=1 // pred_check_branch
      %10 = sbr.rel (0) target = $region5
    $region4: #{tpu_custom_call.1} parent=1 // pred_region
      %s12 = ssub.s32 64, 64
      %13 = vsyncadd [#allocation3], %s12
      %s15 = sshll.u32 [#allocation2], 4
      %s16 = int_to_ptr.vmem [resolvable:$true] %s15
      %18 = dma.hbm_to_vmem [thread:$0]  %s0, 64, %s16, [#allocation3]
    $region5: #{tpu_custom_call.1} parent=1 // pred_fallthru
      _
    // Predicated region
    $region6: #{tpu_custom_call.1} parent=1 // pred_check
      _
    $region7: #{tpu_custom_call.1} parent=1 // pred_check_branch
      %20 = sbr.rel (0) target = $region9
    $region8: #{tpu_custom_call.1} parent=1 // pred_region
      _
    $region9: #{tpu_custom_call.1} parent=1 // pred_fallthru
      _
    // Predicated region
    $region10: #{tpu_custom_call.1} parent=1 // pred_check
      _
    $region11: #{tpu_custom_call.1} parent=1 // pred_check_branch
      %22 = sbr.rel (0) target = $region13
    $region12: #{tpu_custom_call.1} parent=1 // pred_region
      %23 = dma.done [#allocation3], 64
    $region13: #{tpu_custom_call.1} parent=1 // pred_fallthru
      _
    %v24 = vld [vmem:[#allocation2] sm:$0xf]
    %v25 = vld [vmem:[%s1] sm:$0x3]
    %v27 = vlaneseq
    %v28 = vshrl.u32 %v27, 7
    %v29 = vsub.s32 0, %v28
    %v30 = vrot.slane %v25, %v29
    %v31 = vlaneseq
    %v32 = vshrl.u32 %v31, 7
    %v33 = vsub.s32 1, %v32
    %v34 = vrot.slane %v25, %v33
    %v35 = vcombine.low %v30, %v34
    %v37 = vunpack.c.l.s4 1983009808
    %v38 = vunpack.c.0.s8 %v37
    %v39 = vlaneseq
    %v40 = vshrl.u32 %v39, 7
    %v41 = vsub.s32 %v38, %v40
    %v42 = vrot.slane %v35, %v41
    %v44 = vadd.f32 %v24, %v42
    %45 = vst [vmem:[#allocation5] sm:$0xf] %v44
    // Predicated region
    $region14: #{tpu_custom_call.1} parent=1 // pred_check
      _
    $region15: #{tpu_custom_call.1} parent=1 // pred_check_branch
      %47 = sbr.rel (0) target = $region17
    $region16: #{tpu_custom_call.1} parent=1 // pred_region
      %s49 = ssub.s32 64, 64
      %50 = vsyncadd [#allocation4], %s49
      %s52 = sshll.u32 [#allocation5], 4
      %s53 = int_to_ptr.vmem [resolvable:$true] %s52
      %55 = dma.vmem_to_hbm [thread:$0]  %s53, 64, %s2, [#allocation4]
    $region17: #{tpu_custom_call.1} parent=1 // pred_fallthru
      _
    // Predicated region
    $region18: #{tpu_custom_call.1} parent=1 // pred_check
      _
    $region19: #{tpu_custom_call.1} parent=1 // pred_check_branch
      %57 = sbr.rel (0) target = $region21
    $region20: #{tpu_custom_call.1} parent=1 // pred_region
      %58 = dma.done [#allocation4], 64
    $region21: #{tpu_custom_call.1} parent=1 // pred_fallthru
      _
    %59 = vsyncpa [#allocation3], 1
    %60 = vsyncpa [#allocation4], 1

</llo_original>
